<compile_context>
chip_gen: v7x
topology: tpu7x:2x2x1
jax: 0.10.0
libtpu: 0.0.40
codegen_flags: <defaults>
</compile_context>

<pallas_src>
import functools

import jax
import jax.numpy as jnp
from jax.experimental import pallas as pl
from jax.experimental.pallas import tpu as pltpu

BN_EPS = 1e-5


def _fc_bn_relu_kernel(x_ref, w_ref, gamma_ref, beta_ref, o_ref, *, eps):
    # Linear: x (B, in_ch) contracted with w (tn, in_ch) on in_ch -> (B, tn).
    # Native PyTorch weight layout, bf16 operands, f32 MXU accumulation.
    y = jax.lax.dot_general(
        x_ref[...], w_ref[...],
        dimension_numbers=(((1,), (1,)), ((), ())),
        preferred_element_type=jnp.float32)

    # BatchNorm1d, training-mode statistics over the batch axis.  Shifted
    # (two-pass) variance on the materialized y tile: no E[y^2]-E[y]^2
    # cancellation.  Linear bias is omitted: it is exactly removed here.
    mean = jnp.mean(y, axis=0, keepdims=True)
    yc = y - mean
    var = jnp.mean(yc * yc, axis=0, keepdims=True)

    # Fold gamma and rsqrt into one per-feature scale; rsqrt goes to the EUP.
    scale = gamma_ref[...] * jax.lax.rsqrt(var + eps)

    # Normalize + shift + ReLU: one mul + one add + one max per element.
    o_ref[...] = jnp.maximum(yc * scale + beta_ref[...], 0.0).astype(o_ref.dtype)


def fc_layer_forward(x, weight, gamma, beta, *, eps=BN_EPS,
                     compute_dtype=jnp.bfloat16):
    """fc_layer forward: Linear(in_ch, out_ch, bias) -> BatchNorm1d -> ReLU.

    Args:
      x:      (B, in_ch)       float
      weight: (out_ch, in_ch)  float  (native PyTorch nn.Linear layout)
      gamma:  (out_ch,)        float  (BatchNorm1d weight)
      beta:   (out_ch,)        float  (BatchNorm1d bias)
    Returns:
      (B, out_ch) float32
    Note: the nn.Linear bias is not needed -- train-mode BN mean subtraction
    cancels any per-feature constant, so the forward output is identical.
    """
    B, in_ch = x.shape
    out_ch, in_ch_w = weight.shape
    assert in_ch_w == in_ch, (weight.shape, x.shape)

    # MXU operands in bf16 (no-op if caller already passes bf16 / cached cast).
    x_c = x.astype(compute_dtype)
    w_c = weight.astype(compute_dtype)
    gamma2 = gamma.reshape(1, out_ch).astype(jnp.float32)
    beta2 = beta.reshape(1, out_ch).astype(jnp.float32)
    cbytes = jnp.dtype(compute_dtype).itemsize

    # ---------- generation-aware VMEM budget --------------------------------
    try:
        vmem_cap = int(pltpu.get_tpu_info().vmem_capacity_bytes)
    except Exception:
        vmem_cap = 64 * 1024 * 1024  # v7x per-TC size: safest lower bound
    vmem_budget = min(int(vmem_cap * 3) // 4, 100 * 1024 * 1024)

    def vmem_usage(tn, nbuf):
        w_tiles = nbuf * tn * in_ch * cbytes      # streamed weight tiles
        x_res = 2 * B * in_ch * cbytes            # resident x block (dbl-buf)
        params = 2 * 2 * tn * 4                   # gamma/beta tiles (dbl-buf)
        out_tiles = 2 * B * tn * 4                # f32 output tiles (dbl-buf)
        interm = 2 * B * tn * 4                   # f32 y / centred-y live in body
        return w_tiles + x_res + params + out_tiles + interm

    # ---------- tile choice along out_ch -------------------------------------
    if out_ch % 128 == 0:
        # Lane-dense divisors of out_ch (no padding, no trailing slice).
        divisors = [d for d in range(128, out_ch + 1, 128) if out_ch % d == 0]
        if out_ch >= 256:
            # v7x megacore: keep >= 2 grid steps so the "parallel" axis splits
            # across both TensorCores.
            divisors = [d for d in divisors if d < out_ch] or divisors
        feasible = [d for d in divisors if vmem_usage(d, 2) <= vmem_budget]
        tn = max(feasible) if feasible else min(divisors)
    else:
        # out_ch not lane-aligned: one full-extent block (valid BlockSpec) keeps
        # the wrapper free of pad/transpose/slice HBM round-trips.
        # TODO(synk): tiled+padded path for very large non-128-multiple out_ch.
        tn = out_ch
    grid_n = out_ch // tn

    # Long grids with small per-step DMAs: deepen the weight pipeline.
    nbuf = 3 if (grid_n >= 8 and vmem_usage(tn, 3) <= vmem_budget) else 2
    if nbuf == 3:
        w_spec = pl.BlockSpec((tn, in_ch), lambda j: (j, 0),
                              pipeline_mode=pl.Buffered(3))
    else:
        w_spec = pl.BlockSpec((tn, in_ch), lambda j: (j, 0))

    kernel = functools.partial(_fc_bn_relu_kernel, eps=eps)
    out = pl.pallas_call(
        kernel,
        out_shape=jax.ShapeDtypeStruct((B, out_ch), jnp.float32),
        grid_spec=pltpu.PrefetchScalarGridSpec(
            num_scalar_prefetch=0,
            grid=(grid_n,),
            in_specs=[
                pl.BlockSpec((B, in_ch), lambda j: (0, 0)),   # x: resident
                w_spec,                                        # W: streamed tiles
                pl.BlockSpec((1, tn), lambda j: (0, j)),       # gamma tile
                pl.BlockSpec((1, tn), lambda j: (0, j)),       # beta tile
            ],
            out_specs=pl.BlockSpec((B, tn), lambda j: (0, j)),
        ),
        compiler_params=pltpu.CompilerParams(
            # Independent out_ch tiles -> shard across TensorCores.
            dimension_semantics=("parallel",),
            vmem_limit_bytes=vmem_budget,
        ),
        cost_estimate=pl.CostEstimate(
            flops=2 * B * in_ch * out_ch,
            transcendentals=out_ch,
            bytes_accessed=cbytes * (B * in_ch + out_ch * in_ch)
            + 4 * (2 * out_ch + B * out_ch),
        ),
    )(x_c, w_c, gamma2, beta2)

    return out


if __name__ == "__main__":
    # Small shapes consistent with the module: batch=8, in_ch=32, out_ch=32.
    B, in_ch, out_ch = 8, 32, 32

    key = jax.random.PRNGKey(0)
    kx, kw, kb = jax.random.split(key, 3)

    # Deterministic PyTorch-style parameter init.
    bound = 1.0 / jnp.sqrt(jnp.float32(in_ch))
    weight = jax.random.uniform(kw, (out_ch, in_ch), jnp.float32, -bound, bound)
    bias = jax.random.uniform(kb, (out_ch,), jnp.float32, -bound, bound)
    gamma = jnp.ones((out_ch,), jnp.float32)   # BatchNorm1d weight init
    beta = jnp.zeros((out_ch,), jnp.float32)   # BatchNorm1d bias init

    x = jax.random.normal(kx, (B, in_ch), jnp.float32)

    out = fc_layer_forward(x, weight, gamma, beta)
    jax.block_until_ready(out)

    # Pure-JAX reference computed the PyTorch way on the same bf16-rounded
    # operands the kernel feeds the MXU (Linear bias included; it is cancelled
    # exactly by the training-mode BatchNorm mean subtraction).
    xb = x.astype(jnp.bfloat16).astype(jnp.float32)
    wb = weight.astype(jnp.bfloat16).astype(jnp.float32)
    y = xb @ wb.T + bias[None, :]
    mean = jnp.mean(y, axis=0, keepdims=True)
    var = jnp.mean((y - mean) ** 2, axis=0, keepdims=True)
    ref = jnp.maximum(gamma * (y - mean) / jnp.sqrt(var + BN_EPS) + beta, 0.0)

    assert out.shape == (B, out_ch)
    assert jnp.allclose(out, ref, atol=1e-3, rtol=1e-3), "mismatch vs reference"

    print("KERNEL_OK")
</pallas_src>

<mosaic_0001>
module attributes {stable_mosaic.version = 11 : i64} {
  func.func @_fc_bn_relu_kernel(%arg0: i32, %arg1: memref<8x32xbf16, #tpu.memory_space<vmem>>, %arg2: memref<32x32xbf16, #tpu.memory_space<vmem>>, %arg3: memref<1x32xf32, #tpu.memory_space<vmem>>, %arg4: memref<1x32xf32, #tpu.memory_space<vmem>>, %arg5: memref<8x32xf32, #tpu.memory_space<vmem>>) attributes {dimension_semantics = [#tpu.dimension_semantics<parallel>], iteration_bounds = array<i64: 1>, scalar_prefetch = 0 : i64, scratch_operands = 0 : i64, tpu.core_type = #tpu.core_type<tc>, window_params = [{pipeline_mode = #tpu.pipeline_mode<synchronous>, transform_indices = @transform_0, window_bounds = array<i64: 8, 32>}, {transform_indices = @transform_1, window_bounds = array<i64: 32, 32>}, {transform_indices = @transform_2, window_bounds = array<i64: 1, 32>}, {transform_indices = @transform_3, window_bounds = array<i64: 1, 32>}, {transform_indices = @transform_4, window_bounds = array<i64: 8, 32>}]} {
    %c0 = arith.constant 0 : index
    %c0_0 = arith.constant 0 : index
    %0 = vector.load %arg1[%c0, %c0_0] : memref<8x32xbf16, #tpu.memory_space<vmem>>, vector<8x32xbf16>
    %c0_1 = arith.constant 0 : index
    %c0_2 = arith.constant 0 : index
    %1 = vector.load %arg2[%c0_1, %c0_2] : memref<32x32xbf16, #tpu.memory_space<vmem>>, vector<32x32xbf16>
    %cst = arith.constant dense<0.000000e+00> : vector<8x32xf32>
    %2 = tpu.matmul %0, %1, %cst {dimension_numbers = #tpu.dot_dimension_numbers<[1], [1], [0], [0], [0, 0, 1, 0], [], []>} : vector<8x32xbf16>, vector<32x32xbf16>, vector<8x32xf32> -> vector<8x32xf32>
    %cst_3 = arith.constant dense<0.000000e+00> : vector<32xf32>
    %3 = vector.multi_reduction <add>, %2, %cst_3 [0] : vector<8x32xf32> to vector<32xf32>
    %4 = vector.shape_cast %3 : vector<32xf32> to vector<1x32xf32>
    %cst_4 = arith.constant 8.000000e+00 : f32
    %5 = vector.broadcast %cst_4 : f32 to vector<1x32xf32>
    %6 = arith.divf %4, %5 : vector<1x32xf32>
    %7 = vector.broadcast %6 : vector<1x32xf32> to vector<8x32xf32>
    %8 = arith.subf %2, %7 : vector<8x32xf32>
    %9 = arith.mulf %8, %8 : vector<8x32xf32>
    %cst_5 = arith.constant dense<0.000000e+00> : vector<32xf32>
    %10 = vector.multi_reduction <add>, %9, %cst_5 [0] : vector<8x32xf32> to vector<32xf32>
    %11 = vector.shape_cast %10 : vector<32xf32> to vector<1x32xf32>
    %cst_6 = arith.constant 8.000000e+00 : f32
    %12 = vector.broadcast %cst_6 : f32 to vector<1x32xf32>
    %13 = arith.divf %11, %12 : vector<1x32xf32>
    %c0_7 = arith.constant 0 : index
    %c0_8 = arith.constant 0 : index
    %14 = vector.load %arg3[%c0_7, %c0_8] : memref<1x32xf32, #tpu.memory_space<vmem>>, vector<1x32xf32>
    %cst_9 = arith.constant 9.99999974E-6 : f32
    %15 = vector.broadcast %cst_9 : f32 to vector<1x32xf32>
    %16 = arith.addf %13, %15 : vector<1x32xf32>
    %17 = math.rsqrt %16 : vector<1x32xf32>
    %18 = arith.mulf %14, %17 : vector<1x32xf32>
    %19 = vector.broadcast %18 : vector<1x32xf32> to vector<8x32xf32>
    %20 = arith.mulf %8, %19 : vector<8x32xf32>
    %c0_10 = arith.constant 0 : index
    %c0_11 = arith.constant 0 : index
    %21 = vector.load %arg4[%c0_10, %c0_11] : memref<1x32xf32, #tpu.memory_space<vmem>>, vector<1x32xf32>
    %22 = vector.broadcast %21 : vector<1x32xf32> to vector<8x32xf32>
    %23 = arith.addf %20, %22 : vector<8x32xf32>
    %cst_12 = arith.constant 0.000000e+00 : f32
    %24 = vector.broadcast %cst_12 : f32 to vector<8x32xf32>
    %25 = arith.maximumf %23, %24 : vector<8x32xf32>
    %c0_13 = arith.constant 0 : index
    %c0_14 = arith.constant 0 : index
    %26 = vector.load %arg5[%c0_13, %c0_14] : memref<8x32xf32, #tpu.memory_space<vmem>>, vector<8x32xf32>
    tpu.vector_store %arg5[%c0_13, %c0_14], %25 {strides = array<i32>} : memref<8x32xf32, #tpu.memory_space<vmem>>, vector<8x32xf32>,
    return
  }
  func.func @transform_0(%arg0: i32) -> (i32, i32) {
    %c0_i32 = arith.constant 0 : i32
    %c0_i32_0 = arith.constant 0 : i32
    %c0_i32_1 = arith.constant 0 : i32
    return %c0_i32, %c0_i32_0 : i32, i32
  }
  func.func @transform_1(%arg0: i32) -> (i32, i32) {
    %c0_i32 = arith.constant 0 : i32
    %c0_i32_0 = arith.constant 0 : i32
    return %arg0, %c0_i32 : i32, i32
  }
  func.func @transform_2(%arg0: i32) -> (i32, i32) {
    %c0_i32 = arith.constant 0 : i32
    %c0_i32_0 = arith.constant 0 : i32
    return %c0_i32, %arg0 : i32, i32
  }
  func.func @transform_3(%arg0: i32) -> (i32, i32) {
    %c0_i32 = arith.constant 0 : i32
    %c0_i32_0 = arith.constant 0 : i32
    return %c0_i32, %arg0 : i32, i32
  }
  func.func @transform_4(%arg0: i32) -> (i32, i32) {
    %c0_i32 = arith.constant 0 : i32
    %c0_i32_0 = arith.constant 0 : i32
    return %c0_i32, %arg0 : i32, i32
  }
}

</mosaic_0001>

<llo_original>
// kernel: tpu_custom_call.1
$region0: #{tpu_custom_call.1}
  #allocation0 [shape = 'u32[]', space=smem, size = 0x4, offset = 0x4, fixed_abs, tag = 'smem constant byte address 0x4 - core index']
  #allocation1 [shape = 'u32[144,128]{1,0:T(1,128)}', space=vmem, size = 0x12000, scoped, tag = 'internal scratch']
  %s0 = inlined_call_operand.hbm [shape: bf16[8,32], index: 0, kind: input, shape index: {}]
  %s1 = inlined_call_operand.hbm [shape: bf16[32,32], index: 1, kind: input, shape index: {}]
  %s2 = inlined_call_operand.vmem [shape: f32[1,32], index: 2, kind: input, shape index: {}]
  %s3 = inlined_call_operand.vmem [shape: f32[1,32], index: 3, kind: input, shape index: {}]
  %s4 = inlined_call_operand.hbm [shape: f32[8,32], index: 4, kind: output, shape index: {}]
  %s5 = sld [smem:[#allocation0]]
  $region34: #{tpu_custom_call.1} parent=0
    _
  %s7 = ssub.s32 1, %s5
  %s8 = scalar_select 0, %s7, %s5
  $region1: #{tpu_custom_call.1} parent=0
    #allocation2 [shape = 'u8[2048]{0}', space=vmem, size = 0x800, scoped, tag = 'input window, operand 0, single buffered']
    #allocation3 [shape = 's32[1]{0}', space=sflag, size = 0x4, scoped, tag = 'scoped memory for tpu_custom_call.1']
    #allocation4 [shape = 's32[1]{0}', space=sflag, size = 0x4, scoped, tag = 'scoped memory for tpu_custom_call.1']
    #allocation5 [shape = 'u8[8192]{0}', space=vmem, size = 0x2000, scoped, tag = 'input window, operand 1, single buffered']
    #allocation6 [shape = 's32[1]{0}', space=sflag, size = 0x4, scoped, tag = 'scoped memory for tpu_custom_call.1']
    #allocation7 [shape = 'u8[4096]{0}', space=vmem, size = 0x1000, scoped, tag = 'output window, operand 0, single buffered']
    %9 = vsyncpa [#allocation3], 0
    %10 = vsyncpa [#allocation6], 0
    %11 = vsyncpa [#allocation4], 0
    // Predicated region
    $region2: #{tpu_custom_call.1} parent=1 // pred_check
      _
    $region3: #{tpu_custom_call.1} parent=1 // pred_check_branch
      %13 = sbr.rel (0) target = $region5
    $region4: #{tpu_custom_call.1} parent=1 // pred_region
      %s15 = ssub.s32 64, 64
      %16 = vsyncadd [#allocation3], %s15
      %s18 = sshll.u32 [#allocation2], 4
      %s19 = int_to_ptr.vmem [resolvable:$true] %s18
      %21 = dma.hbm_to_vmem [thread:$0]  %s0, 64, %s19, [#allocation3]
    $region5: #{tpu_custom_call.1} parent=1 // pred_fallthru
      _
    // Predicated region
    $region6: #{tpu_custom_call.1} parent=1 // pred_check
      _
    $region7: #{tpu_custom_call.1} parent=1 // pred_check_branch
      %23 = sbr.rel (0) target = $region9
    $region8: #{tpu_custom_call.1} parent=1 // pred_region
      %s25 = ssub.s32 256, 256
      %26 = vsyncadd [#allocation6], %s25
      %s27 = sshll.u32 [#allocation5], 4
      %s28 = int_to_ptr.vmem [resolvable:$true] %s27
      %33 = dma.hbm_to_vmem [thread:$0]  %s1, 256, %s28, [#allocation6], 64, 64, 4
    $region9: #{tpu_custom_call.1} parent=1 // pred_fallthru
      _
    // Predicated region
    $region10: #{tpu_custom_call.1} parent=1 // pred_check
      _
    $region11: #{tpu_custom_call.1} parent=1 // pred_check_branch
      %35 = sbr.rel (0) target = $region13
    $region12: #{tpu_custom_call.1} parent=1 // pred_region
      _
    $region13: #{tpu_custom_call.1} parent=1 // pred_fallthru
      _
    // Predicated region
    $region14: #{tpu_custom_call.1} parent=1 // pred_check
      _
    $region15: #{tpu_custom_call.1} parent=1 // pred_check_branch
      %37 = sbr.rel (0) target = $region17
    $region16: #{tpu_custom_call.1} parent=1 // pred_region
      _
    $region17: #{tpu_custom_call.1} parent=1 // pred_fallthru
      _
    // Predicated region
    $region18: #{tpu_custom_call.1} parent=1 // pred_check
      _
    $region19: #{tpu_custom_call.1} parent=1 // pred_check_branch
      %39 = sbr.rel (0) target = $region21
    $region20: #{tpu_custom_call.1} parent=1 // pred_region
      %40 = dma.done [#allocation3], 64
    $region21: #{tpu_custom_call.1} parent=1 // pred_fallthru
      _
    // Predicated region
    $region22: #{tpu_custom_call.1} parent=1 // pred_check
      _
    $region23: #{tpu_custom_call.1} parent=1 // pred_check_branch
      %42 = sbr.rel (0) target = $region25
    $region24: #{tpu_custom_call.1} parent=1 // pred_region
      %43 = dma.done [#allocation6], 256
    $region25: #{tpu_custom_call.1} parent=1 // pred_fallthru
      _
    %v45 = vld [vmem:[#allocation2] sm:$0xf]
    %v46 = vld [vmem:[#allocation5] sm:$0xf]
    %v47 = vld [vmem:[#allocation5 + $0x4] sm:$0xf]
    %v48 = vld [vmem:[#allocation5 + $0x8] sm:$0xf]
    %v49 = vld [vmem:[#allocation5 + $0xc] sm:$0xf]
    %v54 = vunpack.c.l.b16 %v46
    %v55 = vunpack.c.l.b16 %v47
    %v56 = vunpack.c.l.b16 %v48
    %v57 = vunpack.c.l.b16 %v49
    %v58 = vpack.c.b16 %v55, %v54
    %v59 = vpack.c.b16 %v57, %v56
    %vm60 = vcmask 261120
    %v62 = vsel %vm60, %v45, 0
    %v65 = vsel %vm60, %v58, 0
    %v68 = vsel %vm60, %v59, 0
    %70 = vmatprep.subr.bf16.mxu0 0
    %71 = vmatpush1.bf16.xpose.msra.mxu0 %v65
    %72 = vmatprep.subr.bf16.mxu0 0
    %73 = vmatpush1.bf16.xpose.msra.mxu0 %v68
    %74 = vmatprep.subr.bf16.mxu0 0
    %75 = vmatpush1.bf16.xpose.msra.mxu0 0
    %76 = vmatprep.subr.bf16.mxu0 0
    %77 = vmatpush1.bf16.xpose.msra.mxu0 0
    %78 = vmatprep.subr.bf16.mxu0 0
    %79 = vmatpush1.bf16.xpose.msra.mxu0 0
    %80 = vmatprep.subr.bf16.mxu0 0
    %81 = vmatpush1.bf16.xpose.msra.mxu0 0
    %82 = vmatprep.subr.bf16.mxu0 0
    %83 = vmatpush1.bf16.xpose.msra.mxu0 0
    %84 = vmatprep.subr.bf16.mxu0 0
    %85 = vmatpush1.bf16.xpose.msra.mxu0 0
    %86 = vmatprep.subr.bf16.mxu0 0
    %87 = vmatpush1.bf16.xpose.msra.mxu0 0
    %88 = vmatprep.subr.bf16.mxu0 0
    %89 = vmatpush1.bf16.xpose.msra.mxu0 0
    %90 = vmatprep.subr.bf16.mxu0 0
    %91 = vmatpush1.bf16.xpose.msra.mxu0 0
    %92 = vmatprep.subr.bf16.mxu0 0
    %93 = vmatpush1.bf16.xpose.msra.mxu0 0
    %94 = vmatprep.subr.bf16.mxu0 0
    %95 = vmatpush1.bf16.xpose.msra.mxu0 0
    %96 = vmatprep.subr.bf16.mxu0 0
    %97 = vmatpush1.bf16.xpose.msra.mxu0 0
    %98 = vmatprep.subr.bf16.mxu0 0
    %99 = vmatpush1.bf16.xpose.msra.mxu0 0
    %100 = vmatprep.subr.bf16.mxu0 0
    %101 = vmatpush1.bf16.xpose.msra.mxu0 0
    %102 = vmatprep.mubr.bf16.mxu0 0
    %103 = vmatmul.mubr.bf16.gmra.mrb[0].mxu0 %v62
    %v104 = vpop.f32.mrb[0].mxu0
    %v105 = vadd.f32 0.0, %v104
    %v106 = vpop.f32.mrb[0].mxu0
    %v107 = vpop.f32.mrb[0].mxu0
    %v108 = vpop.f32.mrb[0].mxu0
    %109 = vdwg.mxu0
    %v110 = vsel %vm60, %v105, 0.0
    %v111 = vrot.slane %v110, 4
    %v112 = vadd.f32 %v110, %v111
    %v113 = vrot.slane %v112, 2
    %v114 = vadd.f32 %v112, %v113
    %v115 = vrot.slane %v114, 1
    %v116 = vadd.f32 %v114, %v115
    %v117 = vrcp.pop 8.0
    %v118 = vmul.f32 %v116, %v117
    %v119 = vsub.f32 %v105, %v118
    %v120 = vmul.f32 %v119, %v119
    %v121 = vsel %vm60, %v120, 0.0
    %v122 = vrot.slane %v121, 4
    %v123 = vadd.f32 %v121, %v122
    %v124 = vrot.slane %v123, 2
    %v125 = vadd.f32 %v123, %v124
    %v126 = vrot.slane %v125, 1
    %v127 = vadd.f32 %v125, %v126
    %v128 = vmul.f32 %v127, %v117
    %v129 = vld [vmem:[%s2] sm:$0x1]
    %v130 = vadd.f32 %v128, 1e-05
    %v131 = vrsqrt.pop %v130
    %v132 = vmul.f32 %v129, %v131
    %v134 = vlaneseq
    %v135 = vshrl.u32 %v134, 7
    %v136 = vsub.s32 0, %v135
    %v137 = vrot.slane %v132, %v136
    %v139 = vmul.f32 %v119, %v137
    %v140 = vld [vmem:[%s3] sm:$0x1]
    %v142 = vlaneseq
    %v143 = vshrl.u32 %v142, 7
    %v144 = vsub.s32 0, %v143
    %v145 = vrot.slane %v140, %v144
    %v147 = vadd.f32 %v139, %v145
    %v148 = vmax.f32 %v147, 0.0
    %149 = vst.msk [vmem:[#allocation7] sm:$0xff] %vm60, %v148
    // Predicated region
    $region26: #{tpu_custom_call.1} parent=1 // pred_check
      _
    $region27: #{tpu_custom_call.1} parent=1 // pred_check_branch
      %151 = sbr.rel (0) target = $region29
    $region28: #{tpu_custom_call.1} parent=1 // pred_region
      %s153 = ssub.s32 128, 128
      %154 = vsyncadd [#allocation4], %s153
      %s156 = sshll.u32 [#allocation7], 4
      %s157 = int_to_ptr.vmem [resolvable:$true] %s156
      %159 = dma.vmem_to_hbm [thread:$0]  %s157, 128, %s4, [#allocation4]
    $region29: #{tpu_custom_call.1} parent=1 // pred_fallthru
      _
    // Predicated region
    $region30: #{tpu_custom_call.1} parent=1 // pred_check
      _
    $region31: #{tpu_custom_call.1} parent=1 // pred_check_branch
      %161 = sbr.rel (0) target = $region33
    $region32: #{tpu_custom_call.1} parent=1 // pred_region
      %162 = dma.done [#allocation4], 128
    $region33: #{tpu_custom_call.1} parent=1 // pred_fallthru
      _
    %163 = vsyncpa [#allocation3], 1
    %164 = vsyncpa [#allocation6], 1
    %165 = vsyncpa [#allocation4], 1

</llo_original>
